<compile_context>
chip_gen: v5e
topology: v5e:2x2
jax: 0.10.0
libtpu: 0.0.40
codegen_flags: <defaults>
</compile_context>

<pallas_src>
import jax
import jax.numpy as jnp
from jax import lax
from jax.experimental import pallas as pl
from jax.experimental.pallas import tpu as pltpu


def _make_ce_kernel(L, TL):
    """Builds the per-(batch, spatial-tile) cross-entropy kernel.

    Closes over the static spatial extent L and tile size TL so the kernel can
    mask lanes of a partial trailing tile and reduce lane groups statically.
    """

    def kernel(tgt_ref, x_ref, o_ref):
        # tgt_ref : SMEM int32[N]          (scalar-prefetched class indices)
        # x_ref   : VMEM [1, C, TL]        (one spatial tile of one batch row)
        # o_ref   : VMEM f32[1, 1, out_w]  (lane-reduced partial sums)
        n = pl.program_id(0)

        x = jnp.clip(x_ref[0].astype(jnp.float32), 1e-5, 1.0 - 1e-5)   # (C, TL)

        # Clamped values lie in [1e-5, 1), so exp(x) is in [1, e): the channel
        # (sublane) logsumexp is numerically safe without a max-shift.
        lse = jnp.log(jnp.sum(jnp.exp(x), axis=0, keepdims=True))      # (1, TL)

        # Target row via dynamic sublane slice (no iota / one-hot mask); clamp
        # it the same way so semantics are unchanged.
        tgt = tgt_ref[n]
        x_tgt = jnp.clip(x_ref[0, pl.ds(tgt, 1), :].astype(jnp.float32),
                         1e-5, 1.0 - 1e-5)                              # (1, TL)

        part = lse - x_tgt                                              # (1, TL)

        if L % TL != 0:
            # Zero lanes beyond the true spatial extent (partial last tile).
            lane = lax.broadcasted_iota(jnp.int32, part.shape, 1)
            part = jnp.where(pl.program_id(1) * TL + lane < L, part, 0.0)

        if TL % 128 == 0:
            # Cross-lane reduce in-kernel (slack XLU cycles): HBM writeback is
            # only 128 lanes per tile instead of TL.
            part = part.reshape(TL // 128, 128)
            o_ref[...] = jnp.sum(part, axis=0).reshape(1, 1, 128)
        else:
            # Tiny-L fallback (TL == L < 128): store the lanes directly.
            o_ref[...] = part.reshape(1, 1, TL)

    return kernel


def _choose_spatial_tile(L, C, itemsize, target_bytes=4 << 20):
    """Largest lane-aligned (multiple-of-128) spatial tile whose input block
    C*TL*itemsize fits a multi-MiB VMEM budget (fewer, larger DMAs)."""
    if L < 128 and L % 128 != 0:
        return L  # tiny spatial extent: single full-width tile (legal block)
    max_tl = max(128, (target_bytes // max(C * itemsize, 1)) // 128 * 128)
    l_pad = ((L + 127) // 128) * 128  # spatial extent rounded up to lanes
    return min(max_tl, l_pad)


def cross_entropy_loss(inputs, targets):
    """inputs: [N, C, H, W] (NCHW, like PyTorch); targets: int[N]."""
    N, C = inputs.shape[0], inputs.shape[1]
    x = inputs.reshape(N, C, -1)          # keep dtype; cast to f32 inside kernel
    L = x.shape[2]
    itemsize = jnp.dtype(x.dtype).itemsize

    TL = _choose_spatial_tile(L, C, itemsize)
    num_l = pl.cdiv(L, TL)

    # v7x megacore: keep at least two parallel grid steps when possible so both
    # TensorCores get work (no effect on single-TC v5e/v6e).
    if N * num_l < 2 and L > 128 and TL % 128 == 0:
        TL = max(128, ((pl.cdiv(L, 2) + 127) // 128) * 128)
        num_l = pl.cdiv(L, TL)

    targets = targets.astype(jnp.int32)

    out_w = 128 if TL % 128 == 0 else TL
    out_shape = jax.ShapeDtypeStruct((N, 1, num_l * out_w), jnp.float32)

    # Advisory cost hint for XLA scheduling around the custom call.
    cost = pl.CostEstimate(
        flops=4 * N * C * L,
        transcendentals=N * L * (C + 1),
        bytes_accessed=N * C * L * itemsize + N * 4 + N * num_l * out_w * 4,
    )

    partials = pl.pallas_call(
        _make_ce_kernel(L, TL),
        out_shape=out_shape,
        grid_spec=pltpu.PrefetchScalarGridSpec(
            num_scalar_prefetch=1,
            grid=(N, num_l),
            in_specs=[
                pl.BlockSpec((1, C, TL), lambda n, l, tgt: (n, 0, l)),
            ],
            out_specs=pl.BlockSpec((1, 1, out_w), lambda n, l, tgt: (n, 0, l)),
        ),
        compiler_params=pltpu.CompilerParams(
            dimension_semantics=("parallel", "parallel"),
            vmem_limit_bytes=48 * 1024 * 1024,
        ),
        cost_estimate=cost,
    )(targets, x)

    # loss = (-onehot * logp).mean(0).sum() / L  ==  sum(partials) / (N * L)
    return jnp.sum(partials) / (N * L)


def _reference(inputs, targets):
    N, C = inputs.shape[0], inputs.shape[1]
    x = inputs.reshape(N, C, -1).astype(jnp.float32)
    x = jnp.clip(x, 1e-5, 1.0 - 1e-5)
    logp = jax.nn.log_softmax(x, axis=1)
    onehot = jax.nn.one_hot(targets, C, dtype=jnp.float32)[:, :, None]
    loss = jnp.sum(jnp.mean(-onehot * logp, axis=0))
    return loss / x.shape[2]


if __name__ == "__main__":
    key = jax.random.PRNGKey(0)
    k1, k2 = jax.random.split(key)

    N, C, H, W = 2, 4, 16, 16
    inputs = jax.random.uniform(k1, (N, C, H, W), dtype=jnp.float32)
    targets = jax.random.randint(k2, (N,), 0, C, dtype=jnp.int32)

    loss = cross_entropy_loss(inputs, targets)
    jax.block_until_ready(loss)

    ref = _reference(inputs, targets)
    assert jnp.allclose(loss, ref, rtol=1e-5, atol=1e-6), (loss, ref)

    print("KERNEL_OK")
</pallas_src>

<mosaic_0001>
module attributes {stable_mosaic.version = 11 : i64} {
  func.func @kernel(%arg0: i32, %arg1: i32, %arg2: memref<2xi32, #tpu.memory_space<smem>>, %arg3: memref<1x4x256xf32, #tpu.memory_space<vmem>>, %arg4: memref<1x1x128xf32, #tpu.memory_space<vmem>>) attributes {dimension_semantics = [#tpu.dimension_semantics<parallel>, #tpu.dimension_semantics<parallel>], iteration_bounds = array<i64: 2, 1>, scalar_prefetch = 1 : i64, scratch_operands = 0 : i64, tpu.core_type = #tpu.core_type<tc>, window_params = [{transform_indices = @transform_0, window_bounds = array<i64: 1, 4, 256>}, {transform_indices = @transform_1, window_bounds = array<i64: 1, 1, 128>}]} {
    %c0 = arith.constant 0 : index
    %c0_0 = arith.constant 0 : index
    %c0_1 = arith.constant 0 : index
    %0 = vector.load %arg3[%c0, %c0_0, %c0_1] : memref<1x4x256xf32, #tpu.memory_space<vmem>>, vector<1x4x256xf32>
    %1 = vector.shape_cast %0 : vector<1x4x256xf32> to vector<4x256xf32>
    %cst = arith.constant 9.99999974E-6 : f32
    %cst_2 = arith.constant 0.999989986 : f32
    %2 = vector.broadcast %cst : f32 to vector<4x256xf32>
    %3 = arith.maximumf %2, %1 : vector<4x256xf32>
    %4 = vector.broadcast %cst_2 : f32 to vector<4x256xf32>
    %5 = arith.minimumf %4, %3 : vector<4x256xf32>
    %6 = math.exp %5 : vector<4x256xf32>
    %cst_3 = arith.constant dense<0.000000e+00> : vector<256xf32>
    %7 = vector.multi_reduction <add>, %6, %cst_3 [0] : vector<4x256xf32> to vector<256xf32>
    %8 = vector.shape_cast %7 : vector<256xf32> to vector<1x256xf32>
    %9 = math.log %8 : vector<1x256xf32>
    %10 = arith.index_cast %arg0 : i32 to index
    %11 = memref.load %arg2[%10] : memref<2xi32, #tpu.memory_space<smem>>
    %c0_4 = arith.constant 0 : index
    %12 = arith.index_cast %11 : i32 to index
    %c0_5 = arith.constant 0 : index
    %13 = vector.load %arg3[%c0_4, %12, %c0_5] : memref<1x4x256xf32, #tpu.memory_space<vmem>>, vector<1x1x256xf32>
    %14 = vector.shape_cast %13 : vector<1x1x256xf32> to vector<1x256xf32>
    %cst_6 = arith.constant 9.99999974E-6 : f32
    %cst_7 = arith.constant 0.999989986 : f32
    %15 = vector.broadcast %cst_6 : f32 to vector<1x256xf32>
    %16 = arith.maximumf %15, %14 : vector<1x256xf32>
    %17 = vector.broadcast %cst_7 : f32 to vector<1x256xf32>
    %18 = arith.minimumf %17, %16 : vector<1x256xf32>
    %19 = arith.subf %9, %18 : vector<1x256xf32>
    %20 = vector.shape_cast %19 : vector<1x256xf32> to vector<2x128xf32>
    %cst_8 = arith.constant dense<0.000000e+00> : vector<128xf32>
    %21 = vector.multi_reduction <add>, %20, %cst_8 [0] : vector<2x128xf32> to vector<128xf32>
    %22 = vector.shape_cast %21 : vector<128xf32> to vector<1x1x128xf32>
    %c0_9 = arith.constant 0 : index
    %c0_10 = arith.constant 0 : index
    %c0_11 = arith.constant 0 : index
    %23 = vector.load %arg4[%c0_9, %c0_10, %c0_11] : memref<1x1x128xf32, #tpu.memory_space<vmem>>, vector<1x1x128xf32>
    tpu.vector_store %arg4[%c0_9, %c0_10, %c0_11], %22 {strides = array<i32>} : memref<1x1x128xf32, #tpu.memory_space<vmem>>, vector<1x1x128xf32>,
    return
  }
  func.func @transform_0(%arg0: i32, %arg1: i32, %arg2: memref<2xi32, #tpu.memory_space<smem>>) -> (i32, i32, i32) {
    %c0_i32 = arith.constant 0 : i32
    %c0_i32_0 = arith.constant 0 : i32
    return %arg0, %c0_i32, %arg1 : i32, i32, i32
  }
  func.func @transform_1(%arg0: i32, %arg1: i32, %arg2: memref<2xi32, #tpu.memory_space<smem>>) -> (i32, i32, i32) {
    %c0_i32 = arith.constant 0 : i32
    %c0_i32_0 = arith.constant 0 : i32
    return %arg0, %c0_i32, %arg1 : i32, i32, i32
  }
}

</mosaic_0001>

<llo_original>
// kernel: tpu_custom_call.1
$region0: #{tpu_custom_call.1}
  #allocation0 [shape = 'u32[]', space=smem, size = 0x4, offset = 0x4, fixed_abs, tag = 'smem constant byte address 0x4 - core index']
  #allocation1 [shape = 'u32[72,128]{1,0:T(1,128)}', space=vmem, size = 0x9000, scoped, tag = 'internal scratch']
  #allocation2 [shape = 's32[1]{0}', space=sflag, size = 0x4, scoped, tag = 'scoped memory for tpu_custom_call.1']
  #allocation3 [shape = 'u8[512]{0}', space=smem, size = 0x200, scoped, tag = 'prefetched SMEM operand 0']
  %s0 = inlined_call_operand.hbm [shape: s32[2], index: 0, kind: input, shape index: {}]
  %s1 = inlined_call_operand.hbm [shape: f32[2,4,256], index: 1, kind: input, shape index: {}]
  %s2 = inlined_call_operand.hbm [shape: f32[2,1,128], index: 2, kind: output, shape index: {}]
  %s3 = sld [smem:[#allocation0]]
  $region41: #{tpu_custom_call.1} parent=0
    _
  %s5 = ssub.s32 1, %s3
  %s6 = scalar_select 0, %s5, %s3
  %s8 = sshll.u32 %s0, 4
  %s9 = int_to_ptr.hbm [resolvable:$true] %s8
  %11 = dma.hbm_to_smem %s9, 16, [#allocation3], [#allocation2]
  %13 = dma.done [#allocation2], 16
  %14 = sfence
  $region1: #{tpu_custom_call.1} parent=0
    #allocation4 [shape = 'u8[8192]{0}', space=vmem, size = 0x2000, scoped, tag = 'input window, operand 1']
    #allocation5 [shape = 's32[2]{0}', space=sflag, size = 0x8, scoped, tag = 'scoped memory for tpu_custom_call.1']
    #allocation6 [shape = 's32[2]{0}', space=sflag, size = 0x8, scoped, tag = 'scoped memory for tpu_custom_call.1']
    #allocation7 [shape = 'u8[1024]{0}', space=vmem, size = 0x400, scoped, tag = 'output window, operand 0']
    %15 = vsyncpa [#allocation5], 0
    %s16 = scalar_lea.sflag [#allocation5], 1
    %17 = vsyncpa %s16, 0
    %18 = vsyncpa [#allocation6], 0
    %s19 = scalar_lea.sflag [#allocation6], 1
    %20 = vsyncpa %s19, 0
    loop: start=0, step=1, limit=4
    $region2: #{tpu_custom_call.1} parent=1 // loop_pre_header
      _
    $region3: #{tpu_custom_call.1} parent=1 // loop_header
      %s22 = sphi 0, %s26
      %p23 = scmp.ge.s32.totalorder %s22, 4
      %s29 = sphi 0, %s41
      %s30 = sphi 0, %s37
      %s31 = sphi 0, %s29
      %s32 = sphi 0, %s30
      %s33 = sphi 0, %s31
      %s34 = sphi 0, %s32
      %s46 = sphi 0, %s48
      %s49 = sphi 0, %s46
      %s50 = sphi 0, %s49
      %s66 = sphi 0, %s50
      %s74 = sphi 0, %s76
      %s77 = sphi 0, %s74
      %s78 = sphi 0, %s77
      %s94 = sphi 0, %s78
    $region4: #{tpu_custom_call.1} parent=1 // loop_header_branch
      %25 = sbr.rel (%p23) target = $region8
    $region5: #{tpu_custom_call.1} parent=1 // loop_body
      %s27 = ssub.s32 %s22, 1
      %s28 = ssub.s32 %s22, 2
      %s35 = sadd.s32 1, %s30
      %p36 = scmp.ge.s32.totalorder %s35, 1
      %s37 = scalar_select %p36, 0, %s35
      %s38 = sadd.s32 1, %s29
      %s39 = scalar_select %p36, %s38, %s29
      %p40 = scmp.ge.s32.totalorder %s39, 2
      %s41 = scalar_select %p40, 0, %s39
      %s42 = ssub.s32 %s29, %s41
      %s43 = ssub.s32 %s30, %s37
      %s44 = sor.u32 %s42, %s43
      %p45 = scmp.eq.s32.totalorder %s44, 0
      %s47 = sadd.s32 %s46, 1
      %s48 = scalar_select %p45, %s46, %s47
      %p51 = pneg %p45
      %p52 = scmp.eq.s32.totalorder %s22, 1
      %p53 = por %p51, %p52
      %p54 = scmp.ne.s32.totalorder %s46, %s49
      %p55 = scmp.eq.s32.totalorder %s22, 0
      %p56 = por %p54, %p55
      %p57 = scmp.ne.s32.totalorder %s46, %s49
      %p58 = scmp.eq.s32.totalorder %s27, 1
      %p59 = por %p57, %p58
      %p60 = scmp.ne.s32.totalorder %s49, %s50
      %p61 = scmp.eq.s32.totalorder %s27, 0
      %p62 = por %p60, %p61
      %p63 = scmp.ne.s32.totalorder %s49, %s50
      %p64 = scmp.eq.s32.totalorder %s28, 1
      %p65 = por %p63, %p64
      %p67 = scmp.ne.s32.totalorder %s50, %s66
      %p68 = scmp.eq.s32.totalorder %s28, 0
      %p69 = por %p67, %p68
      %s70 = ssub.s32 %s29, %s41
      %s71 = ssub.s32 %s30, %s37
      %s72 = sor.u32 %s70, %s71
      %p73 = scmp.eq.s32.totalorder %s72, 0
      %s75 = sadd.s32 %s74, 1
      %s76 = scalar_select %p73, %s74, %s75
      %p79 = pneg %p73
      %p80 = scmp.eq.s32.totalorder %s22, 1
      %p81 = por %p79, %p80
      %p82 = scmp.ne.s32.totalorder %s74, %s77
      %p83 = scmp.eq.s32.totalorder %s22, 0
      %p84 = por %p82, %p83
      %p85 = scmp.ne.s32.totalorder %s74, %s77
      %p86 = scmp.eq.s32.totalorder %s27, 1
      %p87 = por %p85, %p86
      %p88 = scmp.ne.s32.totalorder %s77, %s78
      %p89 = scmp.eq.s32.totalorder %s27, 0
      %p90 = por %p88, %p89
      %p91 = scmp.ne.s32.totalorder %s77, %s78
      %p92 = scmp.eq.s32.totalorder %s28, 1
      %p93 = por %p91, %p92
      %p95 = scmp.ne.s32.totalorder %s78, %s94
      %p96 = scmp.eq.s32.totalorder %s28, 0
      %p97 = por %p95, %p96
      %p98 = scmp.le.s32.totalorder 1, %s22
      %p99 = scmp.lt.s32.totalorder %s22, 3
      %p100 = pnand %p98, %p99
      %p101 = pneg %p100
      // Predicated region
      $region9: #{tpu_custom_call.1} parent=5 // pred_check
        _
      $region10: #{tpu_custom_call.1} parent=5 // pred_check_branch
        %103 = sbr.rel (%p100) target = $region12
      $region11: #{tpu_custom_call.1} parent=5 // pred_region
        %s104 = ssub.s32 %s22, 1
      $region12: #{tpu_custom_call.1} parent=5 // pred_fallthru
        _
      %p105 = scmp.lt.s32.totalorder %s22, 2
      // Predicated region
      $region13: #{tpu_custom_call.1} parent=5 // pred_check
        %p106 = pneg %p105
      $region14: #{tpu_custom_call.1} parent=5 // pred_check_branch
        %108 = sbr.rel (%p106) target = $region16
      $region15: #{tpu_custom_call.1} parent=5 // pred_region
        // Predicated region
        $region17: #{tpu_custom_call.1} parent=15 // pred_check
          %p109 = pneg %p56
        $region18: #{tpu_custom_call.1} parent=15 // pred_check_branch
          %111 = sbr.rel (%p109) target = $region20
        $region19: #{tpu_custom_call.1} parent=15 // pred_region
          %s112 = sand.u32 %s46, 1
          %s113 = scalar_lea.sflag [#allocation5], %s112
          %s114 = sand.u32 %s46, 1
          %s115 = smul.addr %s114, 8
          %s116 = scalar_lea.vmem [#allocation4], %s115
          %s117 = smul.u32 2, %s30
          %119 = vsyncadd %s113, 0
          %s120 = smul.addr %s29, 2
          %s121 = sadd.s32 %s117, %s120
          %s122 = smul.addr %s121, 4
          %s123 = scalar_lea.hbm %s1, %s122
          %s125 = sshll.u32 %s123, 4
          %s126 = int_to_ptr.hbm [resolvable:$true] %s125
          %s127 = sshll.u32 %s116, 4
          %s128 = int_to_ptr.vmem [resolvable:$true] %s127
          %130 = dma.hbm_to_vmem [thread:$0]  %s126, 128, %s128, %s113
        $region20: #{tpu_custom_call.1} parent=15 // pred_fallthru
          _
      $region16: #{tpu_custom_call.1} parent=5 // pred_fallthru
        _
      %p131 = scmp.le.s32.totalorder 1, %s22
      %p132 = scmp.lt.s32.totalorder %s22, 3
      %p133 = pnand %p131, %p132
      %p134 = pneg %p133
      // Predicated region
      $region21: #{tpu_custom_call.1} parent=5 // pred_check
        _
      $region22: #{tpu_custom_call.1} parent=5 // pred_check_branch
        %136 = sbr.rel (%p133) target = $region24
      $region23: #{tpu_custom_call.1} parent=5 // pred_region
        %s137 = ssub.s32 %s22, 1
        %s138 = sand.u32 %s49, 1
        %s139 = scalar_lea.sflag [#allocation5], %s138
        %s140 = sand.u32 %s49, 1
        %s141 = smul.addr %s140, 8
        %s142 = scalar_lea.vmem [#allocation4], %s141
        // Predicated region
        $region25: #{tpu_custom_call.1} parent=23 // pred_check
          %p143 = pneg %p62
        $region26: #{tpu_custom_call.1} parent=23 // pred_check_branch
          %145 = sbr.rel (%p143) target = $region28
        $region27: #{tpu_custom_call.1} parent=23 // pred_region
          %147 = dma.done %s139, 128
        $region28: #{tpu_custom_call.1} parent=23 // pred_fallthru
          _
        %s148 = sand.u32 %s49, 1
        %s149 = scalar_lea.sflag [#allocation5], %s148
        %s150 = sand.u32 %s49, 1
        %s151 = smul.addr %s150, 8
        %s152 = scalar_lea.vmem [#allocation4], %s151
        %p153 = pneg %p62
        %p154 = pneg %p59
        %p155 = pneg %p90
        %p156 = pneg %p87
        %s157 = sand.u32 %s77, 1
        %s158 = scalar_lea.sflag [#allocation6], %s157
        %s159 = sand.u32 %s77, 1
        %s160 = scalar_lea.vmem [#allocation7], %s159
        %s161 = smul.u32 2, %s32
        %v162 = vld [vmem:[%s142] sm:$0xff]
        %v163 = vmax.f32 %v162, 1e-05
        %v164 = vmin.f32 %v163, 0.99999
        %v165 = vmul.f32 %v164, 1.442695
        %v166 = vpow.pop %v165
        %168 = vst [vmem:[#allocation1] ss:$2 sm:$0xff] %v166
        %v169 = vld.sshfl [vmem:[#allocation1] sm:$0xff pattern:$0x75316420]
        %v170 = vld.sshfl [vmem:[#allocation1 + $0x8] sm:$0xff pattern:$0x75316420]
        %vm173 = vcmask 1043456
        %v174 = vsel %vm173, %v169, 0.0
        %v175 = vrot.slane %v174, 4
        %v176 = vadd.f32 %v174, %v175
        %v177 = vrot.slane %v176, 2
        %v178 = vadd.f32 %v176, %v177
        %v179 = vrot.slane %v178, 1
        %v180 = vadd.f32 %v178, %v179
        %v181 = vsel %vm173, %v170, 0.0
        %v182 = vrot.slane %v181, 4
        %v183 = vadd.f32 %v181, %v182
        %v184 = vrot.slane %v183, 2
        %v185 = vadd.f32 %v183, %v184
        %v186 = vrot.slane %v185, 1
        %v187 = vadd.f32 %v185, %v186
        %v188 = vlog2.pop %v180
        %v189 = vmul.f32 %v188, 0.6931472
        %v190 = vlog2.pop %v187
        %v191 = vmul.f32 %v190, 0.6931472
        %s192 = sld [smem:[#allocation3 + %s31]]
        %s193 = sshra.s32 %s192, 2
        %s194 = sand.u32 %s192, 3
        %s195 = sshra.s32 %s192, 2
        %s196 = sand.u32 %s192, 3
        %s197 = smul.u32 %s193, 2
        %s198 = smul.u32 %s197, 4
        %s199 = sadd.s32 %s198, %s196
        %s200 = scalar_lea.vmem %s142, %s199 [#allocation4]
        %v201 = vld [vmem:[%s200] ss:$4 sm:$0x3]
        %v202 = vmax.f32 %v201, 1e-05
        %v203 = vmin.f32 %v202, 0.99999
        %v205 = vperm.slane %v203, 0
        %v206 = vperm.slane %v203, 1
        %v209 = vsub.f32 %v189, %v205
        %v210 = vsub.f32 %v191, %v206
        %v213 = vrot.slane %v210, 4
        %v214 = vsel %vm173, %v209, %v213
        %v217 = vunpack.c.l.s4 1935823168
        %v218 = vunpack.c.0.s8 %v217
        %v219 = vperm.slane %v214, %v218
        %vm220 = vcmask 1041408
        %v221 = vsel %vm220, %v219, 0.0
        %v222 = vrot.slane %v221, 4
        %v223 = vadd.f32 %v221, %v222
        %v224 = vrot.slane %v223, 2
        %v225 = vadd.f32 %v223, %v224
        %v226 = vrot.slane %v225, 1
        %v227 = vadd.f32 %v225, %v226
        %228 = vst [vmem:[%s160] sm:$0x1] %v227
        %s229 = sand.u32 %s77, 1
        %s230 = scalar_lea.sflag [#allocation6], %s229
        %s231 = sand.u32 %s77, 1
        %s232 = scalar_lea.vmem [#allocation7], %s231
        // Predicated region
        $region29: #{tpu_custom_call.1} parent=23 // pred_check
          %p233 = pneg %p87
        $region30: #{tpu_custom_call.1} parent=23 // pred_check_branch
          %235 = sbr.rel (%p233) target = $region32
        $region31: #{tpu_custom_call.1} parent=23 // pred_region
          %237 = vsyncadd %s230, 0
          %s238 = sadd.s32 %s32, %s31
          %s239 = scalar_lea.hbm %s2, %s238
          %s241 = sshll.u32 %s232, 4
          %s242 = int_to_ptr.vmem [resolvable:$true] %s241
          %s243 = sshll.u32 %s239, 4
          %s244 = int_to_ptr.hbm [resolvable:$true] %s243
          %246 = dma.vmem_to_hbm [thread:$0]  %s242, 16, %s244, %s230
        $region32: #{tpu_custom_call.1} parent=23 // pred_fallthru
          _
      $region24: #{tpu_custom_call.1} parent=5 // pred_fallthru
        _
      %p247 = scmp.le.s32.totalorder 2, %s22
      // Predicated region
      $region33: #{tpu_custom_call.1} parent=5 // pred_check
        %p248 = pneg %p247
      $region34: #{tpu_custom_call.1} parent=5 // pred_check_branch
        %250 = sbr.rel (%p248) target = $region36
      $region35: #{tpu_custom_call.1} parent=5 // pred_region
        %s251 = ssub.s32 %s22, 2
        // Predicated region
        $region37: #{tpu_custom_call.1} parent=35 // pred_check
          %p252 = pneg %p93
        $region38: #{tpu_custom_call.1} parent=35 // pred_check_branch
          %254 = sbr.rel (%p252) target = $region40
        $region39: #{tpu_custom_call.1} parent=35 // pred_region
          %s255 = sand.u32 %s78, 1
          %s256 = scalar_lea.sflag [#allocation6], %s255
          %s257 = sand.u32 %s78, 1
          %s258 = scalar_lea.vmem [#allocation7], %s257
          %260 = dma.done %s256, 16
        $region40: #{tpu_custom_call.1} parent=35 // pred_fallthru
          _
      $region36: #{tpu_custom_call.1} parent=5 // pred_fallthru
        _
    $region6: #{tpu_custom_call.1} parent=1 // loop_footer
      %s26 = sadd.s32 1, %s22
    $region7: #{tpu_custom_call.1} parent=1 // loop_footer_branch
      %21 = sbr.rel target = $region3
    $region8: #{tpu_custom_call.1} parent=1 // loop_exit
      _
    %261 = vsyncpa [#allocation5], 1
    %s262 = scalar_lea.sflag [#allocation5], 1
    %263 = vsyncpa %s262, 1
    %264 = vsyncpa [#allocation6], 1
    %s265 = scalar_lea.sflag [#allocation6], 1
    %266 = vsyncpa %s265, 1

</llo_original>
